<compile_context>
chip_gen: v5e
topology: v5e:2x2
jax: 0.10.0
libtpu: 0.0.40
codegen_flags: <defaults>
</compile_context>

<pallas_src>
from functools import partial

import jax
import jax.numpy as jnp
from jax.experimental import pallas as pl
from jax.experimental.pallas import tpu as pltpu


def xornet_kernel(xt_ref, p_ref, out_ref):
    """One batch tile, transposed (feature, batch) layout.

    xt_ref  : (IN, TB)            input tile, batch on lanes
    p_ref   : (H, IN + 1 + OUT+1) packed params: [ w1 | b1 | w2.T | b2(pad) ]
    out_ref : (OUT, TB)           output tile, batch on lanes (lane-dense store)
    """
    in_size = xt_ref.shape[0]
    out_size = out_ref.shape[0]

    xt = xt_ref[...]          # (IN, TB)
    p = p_ref[...]            # (H, IN + OUT + 2)

    # Layer 1: h[j, n] = tanh(sum_k w1[j, k] * x[n, k] + b1[j])
    # K (=in_size) is tiny -> unrolled broadcast FMAs on the VPU, no MXU.
    # Each broadcast_in_dim appears exactly once, so nothing to re-materialize.
    acc = p[:, 0:1] * xt[0:1, :]
    for k in range(1, in_size):
        acc = acc + p[:, k : k + 1] * xt[k : k + 1, :]
    h = jnp.tanh(acc + p[:, in_size : in_size + 1])   # (H, TB) f32, tanh on EUP

    # Layer 2: y[o, n] = sum_j h[j, n] * w2[o, j] + b2[o]
    # N (=out_size) is tiny -> sublane reduce on the XLU; stays lane-dense.
    w2_col0 = in_size + 1
    b2_col = w2_col0 + out_size
    rows = []
    for o in range(out_size):
        y = jnp.sum(h * p[:, w2_col0 + o : w2_col0 + o + 1], axis=0, keepdims=True)
        rows.append(y + p[o : o + 1, b2_col : b2_col + 1])   # (1,1) broadcasts
    out = rows[0] if out_size == 1 else jnp.concatenate(rows, axis=0)
    out_ref[...] = out.astype(out_ref.dtype)


@partial(jax.jit, static_argnames=("tile_batch",))
def xornet_forward(x, w1, b1, w2, b2, *, tile_batch=1024):
    """Forward pass matching PyTorch XORNet: tanh(x @ W1.T + b1) @ W2.T + b2.

    x  : (B, IN)
    w1 : (H, IN)   -- nn.Linear(input_size, hidden_size).weight layout
    b1 : (H,)
    w2 : (OUT, H)  -- nn.Linear(hidden_size, output_size).weight layout
    b2 : (OUT,)
    returns (B, OUT)

    tile_batch is capped by vreg pressure, not VMEM: the (H, TB) f32 h/acc
    live set costs TB/32 vregs, so keep TB <= 1024 (identical on v5e/v6e/v7x).
    """
    batch, in_size = x.shape
    hidden = w1.shape[0]
    out_size = w2.shape[0]

    num_tiles = pl.cdiv(batch, tile_batch)

    # Transposed layout: the (large) batch axis is the lane (last) dim.
    xt = x.T  # (IN, B)

    # Pack all parameters into one VMEM-resident operand (H, IN + 1 + OUT + 1):
    #   cols [0, IN)           = w1
    #   col   IN               = b1
    #   cols [IN+1, IN+1+OUT)  = w2.T
    #   col   IN+1+OUT         = b2 (padded to H rows; only first OUT rows used)
    b2_padded = jnp.zeros((hidden, 1), x.dtype).at[:out_size, 0].set(b2)
    params = jnp.concatenate(
        [w1, b1.reshape(hidden, 1), w2.T, b2_padded], axis=1
    ).astype(x.dtype)
    n_pcols = in_size + 1 + out_size + 1

    out_t = pl.pallas_call(
        xornet_kernel,
        # No over-allocation: ragged last batch tile is masked by Pallas
        # (OOB reads are unused garbage columns, OOB writes are dropped).
        out_shape=jax.ShapeDtypeStruct((out_size, batch), x.dtype),
        grid=(num_tiles,),
        in_specs=[
            pl.BlockSpec((in_size, tile_batch), lambda i: (0, i)),  # streamed
            pl.BlockSpec((hidden, n_pcols), lambda i: (0, 0)),      # resident
        ],
        out_specs=pl.BlockSpec((out_size, tile_batch), lambda i: (0, i)),
        compiler_params=pltpu.CompilerParams(
            # v7x: splits the batch grid over 2 TCs when num_tiles > 1;
            # no-op at grid=(1,) and on single-TC v5e/v6e.
            dimension_semantics=("parallel",)
        ),
    )(xt, params)

    return out_t.T  # (B, OUT)


def init_params(key, input_size, hidden_size, output_size):
    """nn.Linear-style init U(-1/sqrt(fan_in), +1/sqrt(fan_in)), PyTorch layouts."""
    k1, k2, k3, k4 = jax.random.split(key, 4)
    lim1 = 1.0 / jnp.sqrt(jnp.float32(input_size))
    lim2 = 1.0 / jnp.sqrt(jnp.float32(hidden_size))
    w1 = jax.random.uniform(k1, (hidden_size, input_size), jnp.float32, -lim1, lim1)
    b1 = jax.random.uniform(k2, (hidden_size,), jnp.float32, -lim1, lim1)
    w2 = jax.random.uniform(k3, (output_size, hidden_size), jnp.float32, -lim2, lim2)
    b2 = jax.random.uniform(k4, (output_size,), jnp.float32, -lim2, lim2)
    return w1, b1, w2, b2


if __name__ == "__main__":
    # XOR-style feature sizes: input=2, hidden=32, output=1. batch=1000 is a
    # deliberate non-multiple of the 1024-wide tile to exercise the ragged
    # (masked) last-block path; with tile_batch=1024 it is a single grid step.
    batch, input_size, hidden_size, output_size = 1000, 2, 32, 1

    key = jax.random.PRNGKey(0)
    kx, kp = jax.random.split(key)
    x = jax.random.uniform(kx, (batch, input_size), jnp.float32)
    w1, b1, w2, b2 = init_params(kp, input_size, hidden_size, output_size)

    out = xornet_forward(x, w1, b1, w2, b2)
    jax.block_until_ready(out)

    # Pure-JAX reference with PyTorch semantics: tanh(x @ W1.T + b1) @ W2.T + b2
    ref = jnp.tanh(x @ w1.T + b1) @ w2.T + b2
    assert out.shape == (batch, output_size)
    assert jnp.allclose(out, ref, atol=1e-5, rtol=1e-5)

    print("KERNEL_OK")
</pallas_src>

<mosaic_0001>
module attributes {stable_mosaic.version = 11 : i64} {
  func.func @xornet_kernel(%arg0: i32, %arg1: memref<2x1024xf32, #tpu.memory_space<vmem>>, %arg2: memref<32x5xf32, #tpu.memory_space<vmem>>, %arg3: memref<1x1024xf32, #tpu.memory_space<vmem>>) attributes {dimension_semantics = [#tpu.dimension_semantics<parallel>], iteration_bounds = array<i64: 1>, scalar_prefetch = 0 : i64, scratch_operands = 0 : i64, tpu.core_type = #tpu.core_type<tc>, window_params = [{transform_indices = @transform_0, window_bounds = array<i64: 2, 1024>}, {pipeline_mode = #tpu.pipeline_mode<synchronous>, transform_indices = @transform_1, window_bounds = array<i64: 32, 5>}, {transform_indices = @transform_2, window_bounds = array<i64: 1, 1024>}]} {
    %c0 = arith.constant 0 : index
    %c0_0 = arith.constant 0 : index
    %0 = vector.load %arg1[%c0, %c0_0] : memref<2x1024xf32, #tpu.memory_space<vmem>>, vector<2x1024xf32>
    %c0_1 = arith.constant 0 : index
    %c0_2 = arith.constant 0 : index
    %1 = vector.load %arg2[%c0_1, %c0_2] : memref<32x5xf32, #tpu.memory_space<vmem>>, vector<32x5xf32>
    %2 = vector.extract_strided_slice %1 {offsets = [0, 0], sizes = [32, 1], strides = [1, 1]} : vector<32x5xf32> to vector<32x1xf32>
    %3 = vector.extract_strided_slice %0 {offsets = [0, 0], sizes = [1, 1024], strides = [1, 1]} : vector<2x1024xf32> to vector<1x1024xf32>
    %4 = vector.broadcast %2 : vector<32x1xf32> to vector<32x1024xf32>
    %5 = vector.broadcast %3 : vector<1x1024xf32> to vector<32x1024xf32>
    %6 = arith.mulf %4, %5 : vector<32x1024xf32>
    %7 = vector.extract_strided_slice %1 {offsets = [0, 1], sizes = [32, 1], strides = [1, 1]} : vector<32x5xf32> to vector<32x1xf32>
    %8 = vector.extract_strided_slice %0 {offsets = [1, 0], sizes = [1, 1024], strides = [1, 1]} : vector<2x1024xf32> to vector<1x1024xf32>
    %9 = vector.broadcast %7 : vector<32x1xf32> to vector<32x1024xf32>
    %10 = vector.broadcast %8 : vector<1x1024xf32> to vector<32x1024xf32>
    %11 = arith.mulf %9, %10 : vector<32x1024xf32>
    %12 = arith.addf %6, %11 : vector<32x1024xf32>
    %13 = vector.extract_strided_slice %1 {offsets = [0, 2], sizes = [32, 1], strides = [1, 1]} : vector<32x5xf32> to vector<32x1xf32>
    %14 = vector.broadcast %13 : vector<32x1xf32> to vector<32x1024xf32>
    %15 = arith.addf %12, %14 : vector<32x1024xf32>
    %16 = math.tanh %15 : vector<32x1024xf32>
    %17 = vector.extract_strided_slice %1 {offsets = [0, 3], sizes = [32, 1], strides = [1, 1]} : vector<32x5xf32> to vector<32x1xf32>
    %18 = vector.broadcast %17 : vector<32x1xf32> to vector<32x1024xf32>
    %19 = arith.mulf %16, %18 : vector<32x1024xf32>
    %cst = arith.constant dense<0.000000e+00> : vector<1024xf32>
    %20 = vector.multi_reduction <add>, %19, %cst [0] : vector<32x1024xf32> to vector<1024xf32>
    %21 = vector.shape_cast %20 : vector<1024xf32> to vector<1x1024xf32>
    %22 = vector.extract_strided_slice %1 {offsets = [0, 4], sizes = [1, 1], strides = [1, 1]} : vector<32x5xf32> to vector<1x1xf32>
    %23 = vector.broadcast %22 : vector<1x1xf32> to vector<1x1024xf32>
    %24 = arith.addf %21, %23 : vector<1x1024xf32>
    %c0_3 = arith.constant 0 : index
    %c0_4 = arith.constant 0 : index
    %25 = vector.load %arg3[%c0_3, %c0_4] : memref<1x1024xf32, #tpu.memory_space<vmem>>, vector<1x1024xf32>
    tpu.vector_store %arg3[%c0_3, %c0_4], %24 {strides = array<i32>} : memref<1x1024xf32, #tpu.memory_space<vmem>>, vector<1x1024xf32>,
    return
  }
  func.func @transform_0(%arg0: i32) -> (i32, i32) {
    %c0_i32 = arith.constant 0 : i32
    %c0_i32_0 = arith.constant 0 : i32
    return %c0_i32, %arg0 : i32, i32
  }
  func.func @transform_1(%arg0: i32) -> (i32, i32) {
    %c0_i32 = arith.constant 0 : i32
    %c0_i32_0 = arith.constant 0 : i32
    %c0_i32_1 = arith.constant 0 : i32
    return %c0_i32, %c0_i32_0 : i32, i32
  }
  func.func @transform_2(%arg0: i32) -> (i32, i32) {
    %c0_i32 = arith.constant 0 : i32
    %c0_i32_0 = arith.constant 0 : i32
    return %c0_i32, %arg0 : i32, i32
  }
}

</mosaic_0001>

<llo_original>
// kernel: xornet_forward.1
$region0: #{xornet_forward.1}
  #allocation0 [shape = 'u32[]', space=smem, size = 0x4, offset = 0x4, fixed_abs, tag = 'smem constant byte address 0x4 - core index']
  #allocation1 [shape = 'u32[72,128]{1,0:T(1,128)}', space=vmem, size = 0x9000, scoped, tag = 'internal scratch']
  %s0 = inlined_call_operand.vmem [shape: f32[2,1000], index: 0, kind: input, shape index: {}]
  %s1 = inlined_call_operand.vmem [shape: f32[32,5], index: 1, kind: input, shape index: {}]
  %s2 = inlined_call_operand.hbm [shape: f32[1,1000], index: 2, kind: output, shape index: {}]
  %s3 = sld [smem:[#allocation0]]
  $region18: #{xornet_forward.1} parent=0
    _
  %s5 = ssub.s32 1, %s3
  %s6 = scalar_select 0, %s5, %s3
  $region1: #{xornet_forward.1} parent=0
    #allocation2 [shape = 'u8[4096]{0}', space=vmem, size = 0x1000, scoped, tag = 'output window, operand 0, single buffered']
    #allocation3 [shape = 's32[1]{0}', space=sflag, size = 0x4, scoped, tag = 'scoped memory for xornet_forward.1']
    %7 = vsyncpa [#allocation3], 0
    // Predicated region
    $region2: #{xornet_forward.1} parent=1 // pred_check
      _
    $region3: #{xornet_forward.1} parent=1 // pred_check_branch
      %9 = sbr.rel (0) target = $region5
    $region4: #{xornet_forward.1} parent=1 // pred_region
      _
    $region5: #{xornet_forward.1} parent=1 // pred_fallthru
      _
    // Predicated region
    $region6: #{xornet_forward.1} parent=1 // pred_check
      _
    $region7: #{xornet_forward.1} parent=1 // pred_check_branch
      %11 = sbr.rel (0) target = $region9
    $region8: #{xornet_forward.1} parent=1 // pred_region
      _
    $region9: #{xornet_forward.1} parent=1 // pred_fallthru
      _
    %v12 = vld [vmem:[%s0] sm:$0xff]
    %v13 = vld [vmem:[%s0 + $0x8] sm:$0xff]
    %v14 = vld [vmem:[%s1] sm:$0xff]
    %v15 = vld [vmem:[%s1 + $0x8] sm:$0xff]
    %v16 = vld [vmem:[%s1 + $0x10] sm:$0xff]
    %v17 = vld [vmem:[%s1 + $0x18] sm:$0xff]
    %19 = vset.pattern.permute.xlu0 0
    %20 = vperm.xlu0 %19, %v14
    %v21 = vpop.permute.xlu0 %20
    %24 = vset.pattern.permute.xlu0 0
    %25 = vperm.xlu0 %24, %v15
    %v26 = vpop.permute.xlu0 %25
    %29 = vset.pattern.permute.xlu0 0
    %30 = vperm.xlu0 %29, %v16
    %v31 = vpop.permute.xlu0 %30
    %34 = vset.pattern.permute.xlu0 0
    %35 = vperm.xlu0 %34, %v17
    %v36 = vpop.permute.xlu0 %35
    %v40 = vperm.slane %v12, 0
    %v41 = vperm.slane %v12, 2
    %v42 = vperm.slane %v12, 4
    %v43 = vperm.slane %v12, 6
    %v44 = vperm.slane %v13, 0
    %v45 = vperm.slane %v13, 2
    %v46 = vperm.slane %v13, 4
    %v47 = vperm.slane %v13, 6
    %v56 = vperm.slane %v40, 0
    %v57 = vperm.slane %v41, 0
    %v58 = vperm.slane %v42, 0
    %v59 = vperm.slane %v43, 0
    %v60 = vperm.slane %v44, 0
    %v61 = vperm.slane %v45, 0
    %v62 = vperm.slane %v46, 0
    %v63 = vperm.slane %v47, 0
    %v64 = vmul.f32 %v21, %v56
    %v65 = vmul.f32 %v21, %v57
    %v66 = vmul.f32 %v21, %v58
    %v67 = vmul.f32 %v21, %v59
    %v68 = vmul.f32 %v21, %v60
    %v69 = vmul.f32 %v21, %v61
    %v70 = vmul.f32 %v21, %v62
    %v71 = vmul.f32 %v21, %v63
    %v72 = vmul.f32 %v26, %v56
    %v73 = vmul.f32 %v26, %v57
    %v74 = vmul.f32 %v26, %v58
    %v75 = vmul.f32 %v26, %v59
    %v76 = vmul.f32 %v26, %v60
    %v77 = vmul.f32 %v26, %v61
    %v78 = vmul.f32 %v26, %v62
    %v79 = vmul.f32 %v26, %v63
    %v80 = vmul.f32 %v31, %v56
    %v81 = vmul.f32 %v31, %v57
    %v82 = vmul.f32 %v31, %v58
    %v83 = vmul.f32 %v31, %v59
    %v84 = vmul.f32 %v31, %v60
    %v85 = vmul.f32 %v31, %v61
    %v86 = vmul.f32 %v31, %v62
    %v87 = vmul.f32 %v31, %v63
    %v88 = vmul.f32 %v36, %v56
    %v89 = vmul.f32 %v36, %v57
    %v90 = vmul.f32 %v36, %v58
    %v91 = vmul.f32 %v36, %v59
    %v92 = vmul.f32 %v36, %v60
    %v93 = vmul.f32 %v36, %v61
    %v94 = vmul.f32 %v36, %v62
    %v95 = vmul.f32 %v36, %v63
    %96 = vset.pattern.permute.xlu0 1
    %97 = vperm.xlu0 %96, %v14
    %v98 = vpop.permute.xlu0 %97
    %100 = vset.pattern.permute.xlu0 1
    %101 = vperm.xlu0 %100, %v15
    %v102 = vpop.permute.xlu0 %101
    %104 = vset.pattern.permute.xlu0 1
    %105 = vperm.xlu0 %104, %v16
    %v106 = vpop.permute.xlu0 %105
    %108 = vset.pattern.permute.xlu0 1
    %109 = vperm.xlu0 %108, %v17
    %v110 = vpop.permute.xlu0 %109
    %v112 = vperm.slane %v12, 1
    %v113 = vperm.slane %v12, 3
    %v114 = vperm.slane %v12, 5
    %v115 = vperm.slane %v12, 7
    %v116 = vperm.slane %v13, 1
    %v117 = vperm.slane %v13, 3
    %v118 = vperm.slane %v13, 5
    %v119 = vperm.slane %v13, 7
    %v128 = vperm.slane %v112, 1
    %v129 = vperm.slane %v113, 1
    %v130 = vperm.slane %v114, 1
    %v131 = vperm.slane %v115, 1
    %v132 = vperm.slane %v116, 1
    %v133 = vperm.slane %v117, 1
    %v134 = vperm.slane %v118, 1
    %v135 = vperm.slane %v119, 1
    %v136 = vmul.f32 %v98, %v128
    %v137 = vmul.f32 %v98, %v129
    %v138 = vmul.f32 %v98, %v130
    %v139 = vmul.f32 %v98, %v131
    %v140 = vmul.f32 %v98, %v132
    %v141 = vmul.f32 %v98, %v133
    %v142 = vmul.f32 %v98, %v134
    %v143 = vmul.f32 %v98, %v135
    %v144 = vmul.f32 %v102, %v128
    %v145 = vmul.f32 %v102, %v129
    %v146 = vmul.f32 %v102, %v130
    %v147 = vmul.f32 %v102, %v131
    %v148 = vmul.f32 %v102, %v132
    %v149 = vmul.f32 %v102, %v133
    %v150 = vmul.f32 %v102, %v134
    %v151 = vmul.f32 %v102, %v135
    %v152 = vmul.f32 %v106, %v128
    %v153 = vmul.f32 %v106, %v129
    %v154 = vmul.f32 %v106, %v130
    %v155 = vmul.f32 %v106, %v131
    %v156 = vmul.f32 %v106, %v132
    %v157 = vmul.f32 %v106, %v133
    %v158 = vmul.f32 %v106, %v134
    %v159 = vmul.f32 %v106, %v135
    %v160 = vmul.f32 %v110, %v128
    %v161 = vmul.f32 %v110, %v129
    %v162 = vmul.f32 %v110, %v130
    %v163 = vmul.f32 %v110, %v131
    %v164 = vmul.f32 %v110, %v132
    %v165 = vmul.f32 %v110, %v133
    %v166 = vmul.f32 %v110, %v134
    %v167 = vmul.f32 %v110, %v135
    %v168 = vadd.f32 %v64, %v136
    %v169 = vadd.f32 %v65, %v137
    %v170 = vadd.f32 %v66, %v138
    %v171 = vadd.f32 %v67, %v139
    %v172 = vadd.f32 %v68, %v140
    %v173 = vadd.f32 %v69, %v141
    %v174 = vadd.f32 %v70, %v142
    %v175 = vadd.f32 %v71, %v143
    %v176 = vadd.f32 %v72, %v144
    %v177 = vadd.f32 %v73, %v145
    %v178 = vadd.f32 %v74, %v146
    %v179 = vadd.f32 %v75, %v147
    %v180 = vadd.f32 %v76, %v148
    %v181 = vadd.f32 %v77, %v149
    %v182 = vadd.f32 %v78, %v150
    %v183 = vadd.f32 %v79, %v151
    %v184 = vadd.f32 %v80, %v152
    %v185 = vadd.f32 %v81, %v153
    %v186 = vadd.f32 %v82, %v154
    %v187 = vadd.f32 %v83, %v155
    %v188 = vadd.f32 %v84, %v156
    %v189 = vadd.f32 %v85, %v157
    %v190 = vadd.f32 %v86, %v158
    %v191 = vadd.f32 %v87, %v159
    %v192 = vadd.f32 %v88, %v160
    %v193 = vadd.f32 %v89, %v161
    %v194 = vadd.f32 %v90, %v162
    %v195 = vadd.f32 %v91, %v163
    %v196 = vadd.f32 %v92, %v164
    %v197 = vadd.f32 %v93, %v165
    %v198 = vadd.f32 %v94, %v166
    %v199 = vadd.f32 %v95, %v167
    %200 = vset.pattern.permute.xlu0 2
    %201 = vperm.xlu0 %200, %v14
    %v202 = vpop.permute.xlu0 %201
    %204 = vset.pattern.permute.xlu0 2
    %205 = vperm.xlu0 %204, %v15
    %v206 = vpop.permute.xlu0 %205
    %208 = vset.pattern.permute.xlu0 2
    %209 = vperm.xlu0 %208, %v16
    %v210 = vpop.permute.xlu0 %209
    %212 = vset.pattern.permute.xlu0 2
    %213 = vperm.xlu0 %212, %v17
    %v214 = vpop.permute.xlu0 %213
    %v216 = vadd.f32 %v168, %v202
    %v217 = vadd.f32 %v169, %v202
    %v218 = vadd.f32 %v170, %v202
    %v219 = vadd.f32 %v171, %v202
    %v220 = vadd.f32 %v172, %v202
    %v221 = vadd.f32 %v173, %v202
    %v222 = vadd.f32 %v174, %v202
    %v223 = vadd.f32 %v175, %v202
    %v224 = vadd.f32 %v176, %v206
    %v225 = vadd.f32 %v177, %v206
    %v226 = vadd.f32 %v178, %v206
    %v227 = vadd.f32 %v179, %v206
    %v228 = vadd.f32 %v180, %v206
    %v229 = vadd.f32 %v181, %v206
    %v230 = vadd.f32 %v182, %v206
    %v231 = vadd.f32 %v183, %v206
    %v232 = vadd.f32 %v184, %v210
    %v233 = vadd.f32 %v185, %v210
    %v234 = vadd.f32 %v186, %v210
    %v235 = vadd.f32 %v187, %v210
    %v236 = vadd.f32 %v188, %v210
    %v237 = vadd.f32 %v189, %v210
    %v238 = vadd.f32 %v190, %v210
    %v239 = vadd.f32 %v191, %v210
    %v240 = vadd.f32 %v192, %v214
    %v241 = vadd.f32 %v193, %v214
    %v242 = vadd.f32 %v194, %v214
    %v243 = vadd.f32 %v195, %v214
    %v244 = vadd.f32 %v196, %v214
    %v245 = vadd.f32 %v197, %v214
    %v246 = vadd.f32 %v198, %v214
    %v247 = vadd.f32 %v199, %v214
    %v248 = vtanh.pop %v216
    %v249 = vtanh.pop %v217
    %v250 = vtanh.pop %v218
    %v251 = vtanh.pop %v219
    %v252 = vtanh.pop %v220
    %v253 = vtanh.pop %v221
    %v254 = vtanh.pop %v222
    %v255 = vtanh.pop %v223
    %v256 = vtanh.pop %v224
    %v257 = vtanh.pop %v225
    %v258 = vtanh.pop %v226
    %v259 = vtanh.pop %v227
    %v260 = vtanh.pop %v228
    %v261 = vtanh.pop %v229
    %v262 = vtanh.pop %v230
    %v263 = vtanh.pop %v231
    %v264 = vtanh.pop %v232
    %v265 = vtanh.pop %v233
    %v266 = vtanh.pop %v234
    %v267 = vtanh.pop %v235
    %v268 = vtanh.pop %v236
    %v269 = vtanh.pop %v237
    %v270 = vtanh.pop %v238
    %v271 = vtanh.pop %v239
    %v272 = vtanh.pop %v240
    %v273 = vtanh.pop %v241
    %v274 = vtanh.pop %v242
    %v275 = vtanh.pop %v243
    %v276 = vtanh.pop %v244
    %v277 = vtanh.pop %v245
    %v278 = vtanh.pop %v246
    %v279 = vtanh.pop %v247
    %280 = vset.pattern.permute.xlu0 3
    %281 = vperm.xlu0 %280, %v14
    %v282 = vpop.permute.xlu0 %281
    %284 = vset.pattern.permute.xlu0 3
    %285 = vperm.xlu0 %284, %v15
    %v286 = vpop.permute.xlu0 %285
    %288 = vset.pattern.permute.xlu0 3
    %289 = vperm.xlu0 %288, %v16
    %v290 = vpop.permute.xlu0 %289
    %292 = vset.pattern.permute.xlu0 3
    %293 = vperm.xlu0 %292, %v17
    %v294 = vpop.permute.xlu0 %293
    %v296 = vmul.f32 %v248, %v282
    %v297 = vmul.f32 %v249, %v282
    %v298 = vmul.f32 %v250, %v282
    %v299 = vmul.f32 %v251, %v282
    %v300 = vmul.f32 %v252, %v282
    %v301 = vmul.f32 %v253, %v282
    %v302 = vmul.f32 %v254, %v282
    %v303 = vmul.f32 %v255, %v282
    %v304 = vmul.f32 %v256, %v286
    %v305 = vmul.f32 %v257, %v286
    %v306 = vmul.f32 %v258, %v286
    %v307 = vmul.f32 %v259, %v286
    %v308 = vmul.f32 %v260, %v286
    %v309 = vmul.f32 %v261, %v286
    %v310 = vmul.f32 %v262, %v286
    %v311 = vmul.f32 %v263, %v286
    %v312 = vmul.f32 %v264, %v290
    %v313 = vmul.f32 %v265, %v290
    %v314 = vmul.f32 %v266, %v290
    %v315 = vmul.f32 %v267, %v290
    %v316 = vmul.f32 %v268, %v290
    %v317 = vmul.f32 %v269, %v290
    %v318 = vmul.f32 %v270, %v290
    %v319 = vmul.f32 %v271, %v290
    %v320 = vmul.f32 %v272, %v294
    %v321 = vmul.f32 %v273, %v294
    %v322 = vmul.f32 %v274, %v294
    %v323 = vmul.f32 %v275, %v294
    %v324 = vmul.f32 %v276, %v294
    %v325 = vmul.f32 %v277, %v294
    %v326 = vmul.f32 %v278, %v294
    %v327 = vmul.f32 %v279, %v294
    %v328 = vadd.f32 %v296, %v304
    %v329 = vadd.f32 %v328, %v312
    %v330 = vadd.f32 %v329, %v320
    %v331 = vrot.slane %v330, 4
    %v332 = vadd.f32 %v330, %v331
    %v333 = vrot.slane %v332, 2
    %v334 = vadd.f32 %v332, %v333
    %v335 = vrot.slane %v334, 1
    %v336 = vadd.f32 %v334, %v335
    %v337 = vadd.f32 %v297, %v305
    %v338 = vadd.f32 %v337, %v313
    %v339 = vadd.f32 %v338, %v321
    %v340 = vrot.slane %v339, 4
    %v341 = vadd.f32 %v339, %v340
    %v342 = vrot.slane %v341, 2
    %v343 = vadd.f32 %v341, %v342
    %v344 = vrot.slane %v343, 1
    %v345 = vadd.f32 %v343, %v344
    %v346 = vadd.f32 %v298, %v306
    %v347 = vadd.f32 %v346, %v314
    %v348 = vadd.f32 %v347, %v322
    %v349 = vrot.slane %v348, 4
    %v350 = vadd.f32 %v348, %v349
    %v351 = vrot.slane %v350, 2
    %v352 = vadd.f32 %v350, %v351
    %v353 = vrot.slane %v352, 1
    %v354 = vadd.f32 %v352, %v353
    %v355 = vadd.f32 %v299, %v307
    %v356 = vadd.f32 %v355, %v315
    %v357 = vadd.f32 %v356, %v323
    %v358 = vrot.slane %v357, 4
    %v359 = vadd.f32 %v357, %v358
    %v360 = vrot.slane %v359, 2
    %v361 = vadd.f32 %v359, %v360
    %v362 = vrot.slane %v361, 1
    %v363 = vadd.f32 %v361, %v362
    %v364 = vadd.f32 %v300, %v308
    %v365 = vadd.f32 %v364, %v316
    %v366 = vadd.f32 %v365, %v324
    %v367 = vrot.slane %v366, 4
    %v368 = vadd.f32 %v366, %v367
    %v369 = vrot.slane %v368, 2
    %v370 = vadd.f32 %v368, %v369
    %v371 = vrot.slane %v370, 1
    %v372 = vadd.f32 %v370, %v371
    %v373 = vadd.f32 %v301, %v309
    %v374 = vadd.f32 %v373, %v317
    %v375 = vadd.f32 %v374, %v325
    %v376 = vrot.slane %v375, 4
    %v377 = vadd.f32 %v375, %v376
    %v378 = vrot.slane %v377, 2
    %v379 = vadd.f32 %v377, %v378
    %v380 = vrot.slane %v379, 1
    %v381 = vadd.f32 %v379, %v380
    %v382 = vadd.f32 %v302, %v310
    %v383 = vadd.f32 %v382, %v318
    %v384 = vadd.f32 %v383, %v326
    %v385 = vrot.slane %v384, 4
    %v386 = vadd.f32 %v384, %v385
    %v387 = vrot.slane %v386, 2
    %v388 = vadd.f32 %v386, %v387
    %v389 = vrot.slane %v388, 1
    %v390 = vadd.f32 %v388, %v389
    %v391 = vadd.f32 %v303, %v311
    %v392 = vadd.f32 %v391, %v319
    %v393 = vadd.f32 %v392, %v327
    %v394 = vrot.slane %v393, 4
    %v395 = vadd.f32 %v393, %v394
    %v396 = vrot.slane %v395, 2
    %v397 = vadd.f32 %v395, %v396
    %v398 = vrot.slane %v397, 1
    %v399 = vadd.f32 %v397, %v398
    %400 = vset.pattern.permute.xlu0 4
    %401 = vperm.xlu0 %400, %v14
    %v402 = vpop.permute.xlu0 %401
    %v404 = vadd.f32 %v336, %v402
    %v405 = vadd.f32 %v345, %v402
    %v406 = vadd.f32 %v354, %v402
    %v407 = vadd.f32 %v363, %v402
    %v408 = vadd.f32 %v372, %v402
    %v409 = vadd.f32 %v381, %v402
    %v410 = vadd.f32 %v390, %v402
    %v411 = vadd.f32 %v399, %v402
    %v420 = vrot.slane %v405, 7
    %v421 = vrot.slane %v406, 6
    %v422 = vrot.slane %v407, 5
    %v423 = vrot.slane %v408, 4
    %v424 = vrot.slane %v409, 3
    %v425 = vrot.slane %v410, 2
    %v426 = vrot.slane %v411, 1
    %vm427 = vcmask 1040384
    %v428 = vsel %vm427, %v404, %v420
    %vm429 = vcmask 1042434
    %v430 = vsel %vm429, %v421, %v422
    %vm431 = vcmask 1041408
    %v432 = vsel %vm431, %v428, %v430
    %vm433 = vcmask 1044484
    %v434 = vsel %vm433, %v423, %v424
    %vm435 = vcmask 1046534
    %v436 = vsel %vm435, %v425, %v426
    %vm437 = vcmask 1045508
    %v438 = vsel %vm437, %v434, %v436
    %vm439 = vcmask 1043456
    %v440 = vsel %vm439, %v432, %v438
    %442 = vst [vmem:[#allocation2] sm:$0xff] %v440
    // Predicated region
    $region10: #{xornet_forward.1} parent=1 // pred_check
      _
    $region11: #{xornet_forward.1} parent=1 // pred_check_branch
      %444 = sbr.rel (0) target = $region13
    $region12: #{xornet_forward.1} parent=1 // pred_region
      %446 = vsyncadd [#allocation3], 0
      %s448 = sshll.u32 [#allocation2], 4
      %s449 = int_to_ptr.vmem [resolvable:$true] %s448
      %s450 = sshll.u32 %s2, 4
      %s451 = int_to_ptr.hbm [resolvable:$true] %s450
      %453 = dma.vmem_to_hbm [thread:$0]  %s449, 128, %s451, [#allocation3]
    $region13: #{xornet_forward.1} parent=1 // pred_fallthru
      _
    // Predicated region
    $region14: #{xornet_forward.1} parent=1 // pred_check
      _
    $region15: #{xornet_forward.1} parent=1 // pred_check_branch
      %455 = sbr.rel (0) target = $region17
    $region16: #{xornet_forward.1} parent=1 // pred_region
      %457 = dma.done [#allocation3], 128
    $region17: #{xornet_forward.1} parent=1 // pred_fallthru
      _
    %458 = vsyncpa [#allocation3], 1

</llo_original>
